<compile_context>
chip_gen: v7x
topology: tpu7x:2x2x1
jax: 0.10.0
libtpu: 0.0.40
codegen_flags: <defaults>
</compile_context>

<pallas_src>
import math
import functools

import jax
import jax.numpy as jnp
from jax.experimental import pallas as pl
from jax.experimental.pallas import tpu as pltpu


_MAX_TILE_ROWS = 4096                    # upper bound on sublane rows per grid step
_VMEM_BUDGET_BYTES = 16 * 1024 * 1024    # double-buffered tile budget (v7x-safe)


def _round_up(x, m):
    return ((x + m - 1) // m) * m


def _lcm(a, b):
    return a * b // math.gcd(a, b)


def _pick_tile(rows, max_tile, step):
    """Full extent for tiny inputs; otherwise a multiple of `step`, aiming for
    >= 2 grid steps so ("parallel",) can shard across both v7x TensorCores."""
    if rows <= step:
        return rows
    target = min(max(max_tile, step), _round_up((rows + 1) // 2, step))
    tile = max(step, (target // step) * step)
    return min(tile, rows)


# --------------------------------------------------------------------------
# Kernels
# --------------------------------------------------------------------------

def _rope_flat_kernel(freq_ref, off_ref, base_ref, cos_ref, sin_ref, *,
                      mscale, pos_per_tile):
    """Lane-dense path (dim % 128 != 0).

    The [seq_len, dim] cache is viewed row-major as [total_rows, 128].
    freq_ref : (tile_rows, 128) f32   per-lane frequency table
    off_ref  : (tile_rows, 128) f32   per-lane (within-row position)*freq phase
    base_ref : (tile_rows, 1)   f32   per-row position base within the tile
    """
    i = pl.program_id(0)
    pos = (i * pos_per_tile).astype(jnp.float32) + base_ref[...]   # (tile, 1)
    emb = pos * freq_ref[...] + off_ref[...]                       # (tile, 128)
    c = jnp.cos(emb)
    s = jnp.sin(emb)
    if mscale != 1.0:
        c = c * mscale
        s = s * mscale
    cos_ref[...] = c.astype(cos_ref.dtype)
    sin_ref[...] = s.astype(sin_ref.dtype)


def _rope_row_kernel(freq_ref, cos_ref, sin_ref, *, mscale, tile_seq,
                     split_halves, half):
    """Row-tiled path ([tile_seq, dim] output tiles), dim % 128 == 0 (or rare
    unaligned fallback).

    split_halves=False: freq_ref is (1, dim) = concat([dcis_freq, dcis_freq]).
    split_halves=True  (dim % 256 == 0): freq_ref is (1, half); cos/sin are
    evaluated once on the unique (tile_seq, half) block and stored twice.
    """
    i = pl.program_id(0)
    row = jax.lax.broadcasted_iota(jnp.int32, (tile_seq, 1), 0).astype(jnp.float32)
    pos = (i * tile_seq).astype(jnp.float32) + row                 # (tile, 1)
    freqs = pos * freq_ref[0, :]                                   # outer product
    c = jnp.cos(freqs)
    s = jnp.sin(freqs)
    if mscale != 1.0:
        c = c * mscale
        s = s * mscale
    c = c.astype(cos_ref.dtype)
    s = s.astype(sin_ref.dtype)
    if split_halves:
        cos_ref[:, :half] = c
        cos_ref[:, half:] = c
        sin_ref[:, :half] = s
        sin_ref[:, half:] = s
    else:
        cos_ref[...] = c
        sin_ref[...] = s


# --------------------------------------------------------------------------
# Wrapper that builds the caches with pallas_call
# --------------------------------------------------------------------------

def dcis_rope_cache(dcis_freq, seq_len, mscale, dtype=jnp.float32):
    """Build cos/sin caches of shape [seq_len, dim] with Pallas kernels."""
    half = int(dcis_freq.shape[0])
    dim = 2 * half
    seq_len = int(seq_len)
    out_dtype = jnp.dtype(dtype)
    itemsize = out_dtype.itemsize
    align = max(8, 32 // itemsize)          # sublane packing of output dtype
    mscale = float(mscale)

    cost = pl.CostEstimate(
        flops=6 * seq_len * dim,            # pos*freq, +phase, *mscale (2 outs)
        transcendentals=2 * seq_len * dim,
        bytes_accessed=2 * seq_len * dim * itemsize + 2 * dim * 4,
    )
    cparams = pltpu.CompilerParams(dimension_semantics=("parallel",))

    dcis_freq = dcis_freq.astype(jnp.float32)
    freq_full = jnp.concatenate([dcis_freq, dcis_freq])            # (dim,)

    # ---- Path A: lane-dense (total_rows, 128) slab for dim % 128 != 0 ------
    if dim % 128 != 0 and (seq_len * dim) % 128 == 0:
        period = dim // math.gcd(dim, 128)        # rows per repeating pattern
        total_rows = (seq_len * dim) // 128       # always a multiple of period
        pos_per_period = (period * 128) // dim

        bytes_per_row = 2 * 128 * itemsize * 2 + (2 * 128 * 4 + 4) * 2
        max_tile = min(_MAX_TILE_ROWS,
                       max(align, _VMEM_BUDGET_BYTES // bytes_per_row))
        step = _lcm(period, align)
        tile_rows = _pick_tile(total_rows, max_tile, step)
        pos_per_tile = (tile_rows * 128) // dim

        # Host-side per-lane / per-row f32 tables (DMA'd once: constant index).
        flat = jnp.arange(period * 128, dtype=jnp.int32)
        freq_period = freq_full[flat % dim].reshape(period, 128)
        off_period = ((flat // dim).astype(jnp.float32).reshape(period, 128)
                      * freq_period)
        reps = tile_rows // period
        freq_tab = jnp.tile(freq_period, (reps, 1))
        off_tab = jnp.tile(off_period, (reps, 1))
        base_tab = ((jnp.arange(tile_rows, dtype=jnp.int32) // period)
                    .astype(jnp.float32).reshape(tile_rows, 1)
                    * float(pos_per_period))

        kernel = functools.partial(_rope_flat_kernel, mscale=mscale,
                                   pos_per_tile=pos_per_tile)
        grid = (pl.cdiv(total_rows, tile_rows),)
        cos_flat, sin_flat = pl.pallas_call(
            kernel,
            out_shape=(jax.ShapeDtypeStruct((total_rows, 128), out_dtype),
                       jax.ShapeDtypeStruct((total_rows, 128), out_dtype)),
            grid=grid,
            in_specs=[pl.BlockSpec((tile_rows, 128), lambda i: (0, 0)),
                      pl.BlockSpec((tile_rows, 128), lambda i: (0, 0)),
                      pl.BlockSpec((tile_rows, 1), lambda i: (0, 0))],
            out_specs=(pl.BlockSpec((tile_rows, 128), lambda i: (i, 0)),
                       pl.BlockSpec((tile_rows, 128), lambda i: (i, 0))),
            compiler_params=cparams,
            cost_estimate=cost,
        )(freq_tab, off_tab, base_tab)
        return (cos_flat.reshape(seq_len, dim),
                sin_flat.reshape(seq_len, dim))

    # ---- Paths B/C: row-tiled [tile_seq, dim] outputs -----------------------
    split = (dim % 256 == 0)                 # half % 128 == 0 -> compute once
    width = half if split else dim
    freq_in = (dcis_freq if split else freq_full).reshape(1, width)

    bytes_per_row = 2 * dim * itemsize * 2
    max_tile = min(_MAX_TILE_ROWS,
                   max(align, _VMEM_BUDGET_BYTES // bytes_per_row))
    tile_seq = _pick_tile(seq_len, max_tile, align)
    grid = (pl.cdiv(seq_len, tile_seq),)

    kernel = functools.partial(_rope_row_kernel, mscale=mscale,
                               tile_seq=tile_seq, split_halves=split, half=half)

    cos, sin = pl.pallas_call(
        kernel,
        out_shape=(jax.ShapeDtypeStruct((seq_len, dim), out_dtype),
                   jax.ShapeDtypeStruct((seq_len, dim), out_dtype)),
        grid=grid,
        in_specs=[pl.BlockSpec((1, width), lambda i: (0, 0))],
        out_specs=(pl.BlockSpec((tile_seq, dim), lambda i: (i, 0)),
                   pl.BlockSpec((tile_seq, dim), lambda i: (i, 0))),
        compiler_params=cparams,
        cost_estimate=cost,
    )(freq_in)
    return cos, sin


# --------------------------------------------------------------------------
# Module port
# --------------------------------------------------------------------------

class LlamaDCISScalingRotaryEmbeddingPallas:
    """JAX/Pallas port of LlamaDCISScalingRotaryEmbedding."""

    def __init__(self, dim, max_position_embeddings=2048, base=10000,
                 scaling_factor=1.0, each_dim_factors=None,
                 dtype=jnp.float32):
        self.dim = dim
        self.max_position_embeddings = max_position_embeddings
        self.base = base
        self.scaling_factor = scaling_factor
        self.dtype = jnp.dtype(dtype)

        # inv_freq = 1 / base^(arange(0, dim, 2) / dim)
        self.inv_freq = 1.0 / (
            base ** (jnp.arange(0, dim, 2, dtype=jnp.float32) / dim)
        )
        self.each_dim_factors = jnp.asarray(each_dim_factors, dtype=jnp.float32)
        self.mscale = float(0.1 * math.log(scaling_factor) + 1.0)

        self._dtype_caches = {}
        self._set_cos_sin_cache(max_position_embeddings, self.dtype)

    def _set_cos_sin_cache(self, seq_len, dtype):
        # NOTE: positions are f32; exact up to ~2^24 (same as the reference).
        self.max_seq_len_cached = seq_len
        self.cache_dtype = jnp.dtype(dtype)
        dcis_freq = self.inv_freq / self.each_dim_factors
        self.cos_cached, self.sin_cached = dcis_rope_cache(
            dcis_freq, seq_len, self.mscale, dtype=self.cache_dtype)
        # Memoized per-dtype views so __call__ never re-casts the full cache.
        self._dtype_caches = {self.cache_dtype: (self.cos_cached, self.sin_cached)}

    def _cache_for_dtype(self, dtype):
        dt = jnp.dtype(dtype)
        if dt not in self._dtype_caches:
            self._dtype_caches[dt] = (self.cos_cached.astype(dt),
                                      self.sin_cached.astype(dt))
        return self._dtype_caches[dt]

    def __call__(self, x, seq_len=None):
        # TODO(synk): cache rebuild on seq_len growth is host-side Python
        # (not jit-safe for traced seq_len), matching the PyTorch module.
        if seq_len > self.max_seq_len_cached:
            self._set_cos_sin_cache(seq_len, x.dtype)
        cos, sin = self._cache_for_dtype(x.dtype)
        if seq_len == self.max_seq_len_cached:
            return cos, sin
        return cos[:seq_len], sin[:seq_len]


# --------------------------------------------------------------------------
# Pure-JAX reference (mirrors the PyTorch module)
# --------------------------------------------------------------------------

def _reference(dim, base, scaling_factor, each_dim_factors, seq_len, dtype):
    inv_freq = 1.0 / (base ** (jnp.arange(0, dim, 2, dtype=jnp.float32) / dim))
    mscale = float(0.1 * math.log(scaling_factor) + 1.0)
    dcis_freq = inv_freq / jnp.asarray(each_dim_factors, jnp.float32)
    t = jnp.arange(seq_len, dtype=jnp.float32)
    freqs = jnp.einsum("i,j->ij", t, dcis_freq)
    emb = jnp.concatenate([freqs, freqs], axis=-1)
    return (jnp.cos(emb) * mscale).astype(dtype), (jnp.sin(emb) * mscale).astype(dtype)


def _check(dim, max_pos, seq_len, base, scaling_factor, key, atol=1e-5, rtol=1e-5):
    each_dim_factors = jnp.linspace(1.0, scaling_factor, dim // 2,
                                    dtype=jnp.float32)
    # x: [bs, num_attention_heads, seq_len, head_size] — only dtype used.
    x = jax.random.normal(key, (2, 4, seq_len, dim), dtype=jnp.float32)

    rope = LlamaDCISScalingRotaryEmbeddingPallas(
        dim=dim, max_position_embeddings=max_pos, base=base,
        scaling_factor=scaling_factor, each_dim_factors=each_dim_factors,
        dtype=jnp.float32)

    cos, sin = rope(x, seq_len=seq_len)
    cos = jax.block_until_ready(cos)
    sin = jax.block_until_ready(sin)

    cos_ref, sin_ref = _reference(dim, base, scaling_factor,
                                  each_dim_factors, seq_len, jnp.float32)
    assert cos.shape == (seq_len, dim) and sin.shape == (seq_len, dim)
    assert jnp.allclose(cos, cos_ref, atol=atol, rtol=rtol), f"cos mismatch dim={dim}"
    assert jnp.allclose(sin, sin_ref, atol=atol, rtol=rtol), f"sin mismatch dim={dim}"
    return rope, each_dim_factors


if __name__ == "__main__":
    key = jax.random.PRNGKey(0)

    # Path A (lane-dense slab, period=1): head_dim=32, max_pos=64, seq_len=8.
    rope32, edf32 = _check(dim=32, max_pos=64, seq_len=8, base=10000,
                           scaling_factor=4.0, key=key)

    # Path A generalized (period=3, dim=48 not a divisor of 128).
    _check(dim=48, max_pos=16, seq_len=16, base=10000, scaling_factor=2.0,
           key=key)

    # Path B (dim % 256 == 0 -> half-compute split, write both halves).
    _check(dim=256, max_pos=32, seq_len=32, base=10000, scaling_factor=8.0,
           key=key)

    # Path C (dim=128: lane-aligned but half=64 not -> full-width row path).
    _check(dim=128, max_pos=24, seq_len=24, base=10000, scaling_factor=2.0,
           key=key)

    # Cache rebuild on seq_len growth (seq_len > max_position_embeddings).
    x_big = jax.random.normal(key, (2, 4, 128, 32), dtype=jnp.float32)
    cos, sin = rope32(x_big, seq_len=128)
    cos = jax.block_until_ready(cos)
    cos_ref, sin_ref = _reference(32, 10000, 4.0, edf32, 128, jnp.float32)
    assert jnp.allclose(cos, cos_ref, atol=1e-5, rtol=1e-5)
    assert jnp.allclose(sin, sin_ref, atol=1e-5, rtol=1e-5)

    # bf16 consumer: memoized dtype view, no per-call full-cache astype.
    x_bf16 = jax.random.normal(key, (2, 4, 16, 32), dtype=jnp.bfloat16)
    cos_b, sin_b = rope32(x_bf16, seq_len=16)
    cos_b = jax.block_until_ready(cos_b)
    cos_ref_b, sin_ref_b = _reference(32, 10000, 4.0, edf32, 16, jnp.bfloat16)
    assert cos_b.dtype == jnp.bfloat16 and sin_b.dtype == jnp.bfloat16
    assert jnp.allclose(cos_b.astype(jnp.float32), cos_ref_b.astype(jnp.float32),
                        atol=1e-2, rtol=1e-2)
    assert jnp.allclose(sin_b.astype(jnp.float32), sin_ref_b.astype(jnp.float32),
                        atol=1e-2, rtol=1e-2)

    print("KERNEL_OK")
</pallas_src>

<mosaic_0001>
module attributes {stable_mosaic.version = 11 : i64} {
  func.func @_rope_flat_kernel(%arg0: i32, %arg1: memref<8x128xf32, #tpu.memory_space<vmem>>, %arg2: memref<8x128xf32, #tpu.memory_space<vmem>>, %arg3: memref<8x1xf32, #tpu.memory_space<vmem>>, %arg4: memref<8x128xf32, #tpu.memory_space<vmem>>, %arg5: memref<8x128xf32, #tpu.memory_space<vmem>>) attributes {dimension_semantics = [#tpu.dimension_semantics<parallel>], iteration_bounds = array<i64: 2>, scalar_prefetch = 0 : i64, scratch_operands = 0 : i64, tpu.core_type = #tpu.core_type<tc>, window_params = [{pipeline_mode = #tpu.pipeline_mode<synchronous>, transform_indices = @transform_0, window_bounds = array<i64: 8, 128>}, {pipeline_mode = #tpu.pipeline_mode<synchronous>, transform_indices = @transform_1, window_bounds = array<i64: 8, 128>}, {pipeline_mode = #tpu.pipeline_mode<synchronous>, transform_indices = @transform_2, window_bounds = array<i64: 8, 1>}, {transform_indices = @transform_3, window_bounds = array<i64: 8, 128>}, {transform_indices = @transform_4, window_bounds = array<i64: 8, 128>}]} {
    %c32_i32 = arith.constant 32 : i32
    %0 = arith.muli %arg0, %c32_i32 : i32
    %1 = arith.sitofp %0 : i32 to f32
    %c0 = arith.constant 0 : index
    %c0_0 = arith.constant 0 : index
    %2 = vector.load %arg3[%c0, %c0_0] : memref<8x1xf32, #tpu.memory_space<vmem>>, vector<8x1xf32>
    %3 = vector.broadcast %1 : f32 to vector<8x1xf32>
    %4 = arith.addf %3, %2 : vector<8x1xf32>
    %c0_1 = arith.constant 0 : index
    %c0_2 = arith.constant 0 : index
    %5 = vector.load %arg1[%c0_1, %c0_2] : memref<8x128xf32, #tpu.memory_space<vmem>>, vector<8x128xf32>
    %6 = vector.broadcast %4 : vector<8x1xf32> to vector<8x128xf32>
    %7 = arith.mulf %6, %5 : vector<8x128xf32>
    %c0_3 = arith.constant 0 : index
    %c0_4 = arith.constant 0 : index
    %8 = vector.load %arg2[%c0_3, %c0_4] : memref<8x128xf32, #tpu.memory_space<vmem>>, vector<8x128xf32>
    %9 = arith.addf %7, %8 : vector<8x128xf32>
    %10 = math.cos %9 : vector<8x128xf32>
    %11 = math.sin %9 : vector<8x128xf32>
    %cst = arith.constant 1.13862944 : f32
    %12 = vector.broadcast %cst : f32 to vector<8x128xf32>
    %13 = arith.mulf %10, %12 : vector<8x128xf32>
    %cst_5 = arith.constant 1.13862944 : f32
    %14 = vector.broadcast %cst_5 : f32 to vector<8x128xf32>
    %15 = arith.mulf %11, %14 : vector<8x128xf32>
    %c0_6 = arith.constant 0 : index
    %c0_7 = arith.constant 0 : index
    %16 = vector.load %arg4[%c0_6, %c0_7] : memref<8x128xf32, #tpu.memory_space<vmem>>, vector<8x128xf32>
    tpu.vector_store %arg4[%c0_6, %c0_7], %13 {strides = array<i32>} : memref<8x128xf32, #tpu.memory_space<vmem>>, vector<8x128xf32>,
    %c0_8 = arith.constant 0 : index
    %c0_9 = arith.constant 0 : index
    %17 = vector.load %arg5[%c0_8, %c0_9] : memref<8x128xf32, #tpu.memory_space<vmem>>, vector<8x128xf32>
    tpu.vector_store %arg5[%c0_8, %c0_9], %15 {strides = array<i32>} : memref<8x128xf32, #tpu.memory_space<vmem>>, vector<8x128xf32>,
    return
  }
  func.func @transform_0(%arg0: i32) -> (i32, i32) {
    %c0_i32 = arith.constant 0 : i32
    %c0_i32_0 = arith.constant 0 : i32
    %c0_i32_1 = arith.constant 0 : i32
    return %c0_i32, %c0_i32_0 : i32, i32
  }
  func.func @transform_1(%arg0: i32) -> (i32, i32) {
    %c0_i32 = arith.constant 0 : i32
    %c0_i32_0 = arith.constant 0 : i32
    %c0_i32_1 = arith.constant 0 : i32
    return %c0_i32, %c0_i32_0 : i32, i32
  }
  func.func @transform_2(%arg0: i32) -> (i32, i32) {
    %c0_i32 = arith.constant 0 : i32
    %c0_i32_0 = arith.constant 0 : i32
    %c0_i32_1 = arith.constant 0 : i32
    return %c0_i32, %c0_i32_0 : i32, i32
  }
  func.func @transform_3(%arg0: i32) -> (i32, i32) {
    %c0_i32 = arith.constant 0 : i32
    %c0_i32_0 = arith.constant 0 : i32
    return %arg0, %c0_i32 : i32, i32
  }
  func.func @transform_4(%arg0: i32) -> (i32, i32) {
    %c0_i32 = arith.constant 0 : i32
    %c0_i32_0 = arith.constant 0 : i32
    return %arg0, %c0_i32 : i32, i32
  }
}

</mosaic_0001>

<llo_original>
// kernel: tpu_custom_call.1
$region0: #{tpu_custom_call.1}
  #allocation0 [shape = 'u32[]', space=smem, size = 0x4, offset = 0x4, fixed_abs, tag = 'smem constant byte address 0x4 - core index']
  #allocation1 [shape = 'u32[144,128]{1,0:T(1,128)}', space=vmem, size = 0x12000, scoped, tag = 'internal scratch']
  %s0 = inlined_call_operand.vmem [shape: f32[8,128], index: 0, kind: input, shape index: {}]
  %s1 = inlined_call_operand.hbm [shape: f32[8,128], index: 1, kind: input, shape index: {}]
  %s2 = inlined_call_operand.vmem [shape: f32[8,1], index: 2, kind: input, shape index: {}]
  %s3 = inlined_call_operand.hbm [shape: f32[16,128], index: 3, kind: output, shape index: {0}]
  %s4 = inlined_call_operand.hbm [shape: f32[16,128], index: 4, kind: output, shape index: {1}]
  %5 = xla_tuple %s3, %s4
  %s6 = sld [smem:[#allocation0]]
  $region57: #{tpu_custom_call.1} parent=0
    _
  %s8 = ssub.s32 1, %s6
  %s9 = scalar_select 0, %s8, %s6
  $region1: #{tpu_custom_call.1} parent=0
    #allocation2 [shape = 'u8[4096]{0}', space=vmem, size = 0x1000, scoped, tag = 'input window, operand 1, single buffered']
    #allocation3 [shape = 's32[2]{0}', space=sflag, size = 0x8, scoped, tag = 'scoped memory for tpu_custom_call.1']
    #allocation4 [shape = 's32[2]{0}', space=sflag, size = 0x8, scoped, tag = 'scoped memory for tpu_custom_call.1']
    #allocation5 [shape = 'u8[8192]{0}', space=vmem, size = 0x2000, scoped, tag = 'output window, operand 0']
    #allocation6 [shape = 'u8[8192]{0}', space=vmem, size = 0x2000, scoped, tag = 'output window, operand 1']
    #allocation7 [shape = 's32[2]{0}', space=sflag, size = 0x8, scoped, tag = 'scoped memory for tpu_custom_call.1']
    %10 = vsyncpa [#allocation3], 0
    %11 = vsyncpa [#allocation4], 0
    %s12 = scalar_lea.sflag [#allocation4], 1
    %13 = vsyncpa %s12, 0
    %14 = vsyncpa [#allocation7], 0
    %s15 = scalar_lea.sflag [#allocation7], 1
    %16 = vsyncpa %s15, 0
    loop: start=0, step=1, limit=4
    $region2: #{tpu_custom_call.1} parent=1 // loop_pre_header
      _
    $region3: #{tpu_custom_call.1} parent=1 // loop_header
      %s18 = sphi 0, %s22
      %p19 = scmp.ge.s32.totalorder %s18, 4
      %s26 = sphi 0, %s26
      %s28 = sphi 0, %s26
      %s29 = sphi 0, %s28
      %s43 = sphi 0, %s29
      %s47 = sphi 0, %s47
      %s49 = sphi 0, %s47
      %s50 = sphi 0, %s49
      %s64 = sphi 0, %s50
      %s68 = sphi 0, %s68
      %s70 = sphi 0, %s68
      %s71 = sphi 0, %s70
      %s85 = sphi 0, %s71
      %s91 = sphi 0, %s93
      %s94 = sphi 0, %s91
      %s95 = sphi 0, %s94
      %s111 = sphi 0, %s95
      %s117 = sphi 0, %s119
      %s120 = sphi 0, %s117
      %s121 = sphi 0, %s120
      %s137 = sphi 0, %s121
    $region4: #{tpu_custom_call.1} parent=1 // loop_header_branch
      %21 = sbr.rel (%p19) target = $region8
    $region5: #{tpu_custom_call.1} parent=1 // loop_body
      %s23 = ssub.s32 %s18, 1
      %s24 = ssub.s32 %s18, 2
      %s25 = sadd.s32 %s18, 1
      %s27 = sadd.s32 %s26, 1
      %p30 = scmp.eq.s32.totalorder %s18, 1
      %p31 = scmp.ne.s32.totalorder %s26, %s28
      %p32 = scmp.eq.s32.totalorder %s18, 0
      %p33 = por %p31, %p32
      %p34 = scmp.ne.s32.totalorder %s26, %s28
      %p35 = scmp.eq.s32.totalorder %s23, 1
      %p36 = por %p34, %p35
      %p37 = scmp.ne.s32.totalorder %s28, %s29
      %p38 = scmp.eq.s32.totalorder %s23, 0
      %p39 = por %p37, %p38
      %p40 = scmp.ne.s32.totalorder %s28, %s29
      %p41 = scmp.eq.s32.totalorder %s24, 1
      %p42 = por %p40, %p41
      %p44 = scmp.ne.s32.totalorder %s29, %s43
      %p45 = scmp.eq.s32.totalorder %s24, 0
      %p46 = por %p44, %p45
      %s48 = sadd.s32 %s47, 1
      %p51 = scmp.eq.s32.totalorder %s18, 1
      %p52 = scmp.ne.s32.totalorder %s47, %s49
      %p53 = scmp.eq.s32.totalorder %s18, 0
      %p54 = por %p52, %p53
      %p55 = scmp.ne.s32.totalorder %s47, %s49
      %p56 = scmp.eq.s32.totalorder %s23, 1
      %p57 = por %p55, %p56
      %p58 = scmp.ne.s32.totalorder %s49, %s50
      %p59 = scmp.eq.s32.totalorder %s23, 0
      %p60 = por %p58, %p59
      %p61 = scmp.ne.s32.totalorder %s49, %s50
      %p62 = scmp.eq.s32.totalorder %s24, 1
      %p63 = por %p61, %p62
      %p65 = scmp.ne.s32.totalorder %s50, %s64
      %p66 = scmp.eq.s32.totalorder %s24, 0
      %p67 = por %p65, %p66
      %s69 = sadd.s32 %s68, 1
      %p72 = scmp.eq.s32.totalorder %s18, 1
      %p73 = scmp.ne.s32.totalorder %s68, %s70
      %p74 = scmp.eq.s32.totalorder %s18, 0
      %p75 = por %p73, %p74
      %p76 = scmp.ne.s32.totalorder %s68, %s70
      %p77 = scmp.eq.s32.totalorder %s23, 1
      %p78 = por %p76, %p77
      %p79 = scmp.ne.s32.totalorder %s70, %s71
      %p80 = scmp.eq.s32.totalorder %s23, 0
      %p81 = por %p79, %p80
      %p82 = scmp.ne.s32.totalorder %s70, %s71
      %p83 = scmp.eq.s32.totalorder %s24, 1
      %p84 = por %p82, %p83
      %p86 = scmp.ne.s32.totalorder %s71, %s85
      %p87 = scmp.eq.s32.totalorder %s24, 0
      %p88 = por %p86, %p87
      %s89 = ssub.s32 %s18, %s25
      %p90 = scmp.eq.s32.totalorder %s89, 0
      %s92 = sadd.s32 %s91, 1
      %s93 = scalar_select %p90, %s91, %s92
      %p96 = pneg %p90
      %p97 = scmp.eq.s32.totalorder %s18, 1
      %p98 = por %p96, %p97
      %p99 = scmp.ne.s32.totalorder %s91, %s94
      %p100 = scmp.eq.s32.totalorder %s18, 0
      %p101 = por %p99, %p100
      %p102 = scmp.ne.s32.totalorder %s91, %s94
      %p103 = scmp.eq.s32.totalorder %s23, 1
      %p104 = por %p102, %p103
      %p105 = scmp.ne.s32.totalorder %s94, %s95
      %p106 = scmp.eq.s32.totalorder %s23, 0
      %p107 = por %p105, %p106
      %p108 = scmp.ne.s32.totalorder %s94, %s95
      %p109 = scmp.eq.s32.totalorder %s24, 1
      %p110 = por %p108, %p109
      %p112 = scmp.ne.s32.totalorder %s95, %s111
      %p113 = scmp.eq.s32.totalorder %s24, 0
      %p114 = por %p112, %p113
      %s115 = ssub.s32 %s18, %s25
      %p116 = scmp.eq.s32.totalorder %s115, 0
      %s118 = sadd.s32 %s117, 1
      %s119 = scalar_select %p116, %s117, %s118
      %p122 = pneg %p116
      %p123 = scmp.eq.s32.totalorder %s18, 1
      %p124 = por %p122, %p123
      %p125 = scmp.ne.s32.totalorder %s117, %s120
      %p126 = scmp.eq.s32.totalorder %s18, 0
      %p127 = por %p125, %p126
      %p128 = scmp.ne.s32.totalorder %s117, %s120
      %p129 = scmp.eq.s32.totalorder %s23, 1
      %p130 = por %p128, %p129
      %p131 = scmp.ne.s32.totalorder %s120, %s121
      %p132 = scmp.eq.s32.totalorder %s23, 0
      %p133 = por %p131, %p132
      %p134 = scmp.ne.s32.totalorder %s120, %s121
      %p135 = scmp.eq.s32.totalorder %s24, 1
      %p136 = por %p134, %p135
      %p138 = scmp.ne.s32.totalorder %s121, %s137
      %p139 = scmp.eq.s32.totalorder %s24, 0
      %p140 = por %p138, %p139
      %p141 = scmp.le.s32.totalorder 1, %s18
      %p142 = scmp.lt.s32.totalorder %s18, 3
      %p143 = pnand %p141, %p142
      %p144 = pneg %p143
      // Predicated region
      $region9: #{tpu_custom_call.1} parent=5 // pred_check
        _
      $region10: #{tpu_custom_call.1} parent=5 // pred_check_branch
        %146 = sbr.rel (%p143) target = $region12
      $region11: #{tpu_custom_call.1} parent=5 // pred_region
        %s147 = ssub.s32 %s18, 1
        // Predicated region
        $region13: #{tpu_custom_call.1} parent=11 // pred_check
          %p148 = pneg %p39
        $region14: #{tpu_custom_call.1} parent=11 // pred_check_branch
          %150 = sbr.rel (%p148) target = $region16
        $region15: #{tpu_custom_call.1} parent=11 // pred_region
          _
        $region16: #{tpu_custom_call.1} parent=11 // pred_fallthru
          _
        // Predicated region
        $region17: #{tpu_custom_call.1} parent=11 // pred_check
          %p151 = pneg %p60
        $region18: #{tpu_custom_call.1} parent=11 // pred_check_branch
          %153 = sbr.rel (%p151) target = $region20
        $region19: #{tpu_custom_call.1} parent=11 // pred_region
          %s155 = ssub.s32 128, 128
          %156 = vsyncadd [#allocation3], %s155
          %s158 = sshll.u32 [#allocation2], 4
          %s159 = int_to_ptr.vmem [resolvable:$true] %s158
          %161 = dma.hbm_to_vmem [thread:$0]  %s1, 128, %s159, [#allocation3]
        $region20: #{tpu_custom_call.1} parent=11 // pred_fallthru
          _
        // Predicated region
        $region21: #{tpu_custom_call.1} parent=11 // pred_check
          %p162 = pneg %p81
        $region22: #{tpu_custom_call.1} parent=11 // pred_check_branch
          %164 = sbr.rel (%p162) target = $region24
        $region23: #{tpu_custom_call.1} parent=11 // pred_region
          _
        $region24: #{tpu_custom_call.1} parent=11 // pred_fallthru
          _
      $region12: #{tpu_custom_call.1} parent=5 // pred_fallthru
        _
      %p165 = scmp.lt.s32.totalorder %s18, 2
      // Predicated region
      $region25: #{tpu_custom_call.1} parent=5 // pred_check
        %p166 = pneg %p165
      $region26: #{tpu_custom_call.1} parent=5 // pred_check_branch
        %168 = sbr.rel (%p166) target = $region28
      $region27: #{tpu_custom_call.1} parent=5 // pred_region
        _
      $region28: #{tpu_custom_call.1} parent=5 // pred_fallthru
        _
      %p169 = scmp.le.s32.totalorder 1, %s18
      %p170 = scmp.lt.s32.totalorder %s18, 3
      %p171 = pnand %p169, %p170
      %p172 = pneg %p171
      // Predicated region
      $region29: #{tpu_custom_call.1} parent=5 // pred_check
        _
      $region30: #{tpu_custom_call.1} parent=5 // pred_check_branch
        %174 = sbr.rel (%p171) target = $region32
      $region31: #{tpu_custom_call.1} parent=5 // pred_region
        %s175 = ssub.s32 %s18, 1
        // Predicated region
        $region33: #{tpu_custom_call.1} parent=31 // pred_check
          %p176 = pneg %p60
        $region34: #{tpu_custom_call.1} parent=31 // pred_check_branch
          %178 = sbr.rel (%p176) target = $region36
        $region35: #{tpu_custom_call.1} parent=31 // pred_region
          %179 = dma.done [#allocation3], 128
        $region36: #{tpu_custom_call.1} parent=31 // pred_fallthru
          _
        %p180 = pneg %p39
        %p181 = pneg %p36
        %p182 = pneg %p60
        %p183 = pneg %p57
        %p184 = pneg %p81
        %p185 = pneg %p78
        %p186 = pneg %p107
        %p187 = pneg %p104
        %s188 = sand.u32 %s94, 1
        %s189 = scalar_lea.sflag [#allocation4], %s188
        %s190 = sand.u32 %s94, 1
        %s191 = smul.addr %s190, 8
        %s192 = scalar_lea.vmem [#allocation5], %s191
        %p193 = pneg %p133
        %p194 = pneg %p130
        %s195 = sand.u32 %s120, 1
        %s196 = scalar_lea.sflag [#allocation7], %s195
        %s197 = sand.u32 %s120, 1
        %s198 = smul.addr %s197, 8
        %s199 = scalar_lea.vmem [#allocation6], %s198
        %s200 = smul.u32 %s23, 32
        %s201 = scvt.s32.f32 %s200
        %v202 = vld [vmem:[%s2] sm:$0xff]
        %v203 = vstv %s201
        %v204 = vadd.f32 %v203, %v202
        %v205 = vld [vmem:[%s0] sm:$0xff]
        %207 = vset.pattern.permute.xlu0 0
        %208 = vperm.xlu0 %207, %v204
        %v209 = vpop.permute.xlu0 %208
        %v211 = vmul.f32 %v209, %v205
        %v212 = vld [vmem:[#allocation2] sm:$0xff]
        %v213 = vadd.f32 %v211, %v212
        %v214 = vand.u32 2147483647, %v213
        %vm215 = vcmp.le.f32.partialorder %v214, 0.7853982
        %vm216 = vcmp.lt.s32.totalorder %v213, 0
        %v217 = vand.u32 %v213, 2139095040
        %v218 = vshrl.u32 %v217, 23
        %v219 = vsub.s32 %v218, 127
        %v220 = vand.u32 2147483647, %v213
        %v221 = vand.u32 %v220, 8388607
        %v222 = vor.u32 %v221, 8388608
        %v223 = vsub.s32 0, %v222
        %v224 = vadd.s32 %v219, 1
        %vm225 = vcmp.gt.s32.totalorder %v224, 0
        %v226 = vsel %vm225, %v224, 0
        %v227 = vshrl.u32 %v226, 5
        %v228 = vand.u32 %v226, 31
        %v229 = vsub.s32 32, %v228
        %v230 = vshrl.u32 683565275, %v229
        %v231 = vshll.u32 683565275, %v228
        %v232 = vshrl.u32 2475754826, %v229
        %v233 = vor.u32 %v231, %v232
        %v234 = vshll.u32 2475754826, %v228
        %v235 = vshrl.u32 2131351028, %v229
        %v236 = vor.u32 %v234, %v235
        %v237 = vshll.u32 2131351028, %v228
        %v238 = vshrl.u32 2102212464, %v229
        %v239 = vor.u32 %v237, %v238
        %v240 = vshll.u32 2102212464, %v228
        %v241 = vshrl.u32 920167782, %v229
        %v242 = vor.u32 %v240, %v241
        %v243 = vshll.u32 920167782, %v228
        %v244 = vshrl.u32 1326507024, %v229
        %v245 = vor.u32 %v243, %v244
        %vm246 = vcmp.lt.s32.totalorder %v227, 1
        %vm247 = vcmp.lt.s32.totalorder %v227, 2
        %vm248 = vcmp.lt.s32.totalorder %v227, 3
        %vm249 = vcmp.lt.s32.totalorder %v227, 4
        %v250 = vsel %vm246, %v230, %v233
        %v251 = vsel %vm249, %v239, 2102212464
        %v252 = vsel %vm248, %v236, %v251
        %v253 = vsel %vm247, %v250, %v252
        %v254 = vsel %vm246, %v233, %v236
        %v255 = vsel %vm249, %v242, 920167782
        %v256 = vsel %vm248, %v239, %v255
        %v257 = vsel %vm247, %v254, %v256
        %v258 = vsel %vm246, %v236, %v239
        %v259 = vsel %vm249, %v245, 1326507024
        %v260 = vsel %vm248, %v242, %v259
        %v261 = vsel %vm247, %v258, %v260
        %v262 = vshll.u32 %v222, 8
        %v263 = vmul.u32.u64.compose %v262, %v261
        %v264 = vextract.low.u32 %v263
        %v265 = vextract.high.u32 %v263
        %v266 = vmul.u32.u64.compose %v262, %v257
        %v267 = vextract.low.u32 %v266
        %v268 = vextract.high.u32 %v266
        %v269 = vmul.u32 %v262, %v253
        %v270 = vadd.s32 %v265, %v267
        %vm271 = vc.u32 %v265, %v267
        %v272 = vadd.s32 %v268, 1
        %v273 = vsel %vm271, %v272, %v268
        %v274 = vadd.s32 %v269, %v273
        %v275 = vadd.s32 %v274, 536870912
        %v276 = vshrl.u32 %v275, 30
        %v277 = vshll.u32 %v276, 30
        %v278 = vsub.s32 %v274, %v277
        %vm279 = vcmp.lt.s32.totalorder %v278, 0
        %v280 = vsub.s32 0, %v278
        %v281 = vsel %vm279, %v280, %v278
        %v282 = vclz %v281
        %v283 = vsub.s32 %v282, 2
        %vm284 = vcmp.gt.s32.totalorder 0, %v283
        %v285 = vsel %vm284, 0, %v283
        %v286 = vsub.s32 32, %v285
        %v287 = vshll.u32 %v278, %v285
        %v288 = vshrl.u32 %v270, %v286
        %v289 = vor.u32 %v287, %v288
        %v290 = vsub.s32 4294967266, %v285
        %v291 = vadd.s32 %v290, 127
        %v292 = vshll.u32 %v291, 23
        %v293 = vor.u32 4788187, %v292
        %v294 = vand.u32 2147483647, %v293
        %v296 = vcvt.s32.f32 %v289
        %v297 = vmul.f32 %v296, %v294
        %v298 = vxor.u32 %v297, 2147483648
        %v299 = vsel %vm216, %v298, %v297
        %v300 = vsub.s32 4, %v276
        %v301 = vsel %vm216, %v300, %v276
        %v302 = vsel %vm215, %v213, %v299
        %v303 = vsel %vm215, 0, %v301
        %v304 = vcosq.f32.pop %v302
        %v305 = vsinq.f32.pop %v302
        %vm306 = vweird.f32 %v213
        %v307 = vand.u32 %v303, 3
        %vm308 = vcmp.lt.s32.totalorder %v307, 2
        %vm309 = vcmp.eq.s32.totalorder %v307, 0
        %v310 = vxor.u32 %v305, 2147483648
        %v311 = vsel %vm309, %v304, %v310
        %vm312 = vcmp.eq.s32.totalorder %v307, 2
        %v313 = vxor.u32 %v304, 2147483648
        %v314 = vsel %vm312, %v313, %v305
        %v315 = vsel %vm308, %v311, %v314
        %v316 = vsel %vm306, nan, %v315
        %v317 = vand.u32 2147483647, %v213
        %vm318 = vcmp.le.f32.partialorder %v317, 0.7853982
        %vm319 = vcmp.lt.s32.totalorder %v213, 0
        %v320 = vand.u32 %v213, 2139095040
        %v321 = vshrl.u32 %v320, 23
        %v322 = vsub.s32 %v321, 127
        %v323 = vand.u32 2147483647, %v213
        %v324 = vand.u32 %v323, 8388607
        %v325 = vor.u32 %v324, 8388608
        %v326 = vsub.s32 0, %v325
        %v327 = vadd.s32 %v322, 1
        %vm328 = vcmp.gt.s32.totalorder %v327, 0
        %v329 = vsel %vm328, %v327, 0
        %v330 = vshrl.u32 %v329, 5
        %v331 = vand.u32 %v329, 31
        %v332 = vsub.s32 32, %v331
        %v333 = vshrl.u32 683565275, %v332
        %v334 = vshll.u32 683565275, %v331
        %v335 = vshrl.u32 2475754826, %v332
        %v336 = vor.u32 %v334, %v335
        %v337 = vshll.u32 2475754826, %v331
        %v338 = vshrl.u32 2131351028, %v332
        %v339 = vor.u32 %v337, %v338
        %v340 = vshll.u32 2131351028, %v331
        %v341 = vshrl.u32 2102212464, %v332
        %v342 = vor.u32 %v340, %v341
        %v343 = vshll.u32 2102212464, %v331
        %v344 = vshrl.u32 920167782, %v332
        %v345 = vor.u32 %v343, %v344
        %v346 = vshll.u32 920167782, %v331
        %v347 = vshrl.u32 1326507024, %v332
        %v348 = vor.u32 %v346, %v347
        %vm349 = vcmp.lt.s32.totalorder %v330, 1
        %vm350 = vcmp.lt.s32.totalorder %v330, 2
        %vm351 = vcmp.lt.s32.totalorder %v330, 3
        %vm352 = vcmp.lt.s32.totalorder %v330, 4
        %v353 = vsel %vm349, %v333, %v336
        %v354 = vsel %vm352, %v342, 2102212464
        %v355 = vsel %vm351, %v339, %v354
        %v356 = vsel %vm350, %v353, %v355
        %v357 = vsel %vm349, %v336, %v339
        %v358 = vsel %vm352, %v345, 920167782
        %v359 = vsel %vm351, %v342, %v358
        %v360 = vsel %vm350, %v357, %v359
        %v361 = vsel %vm349, %v339, %v342
        %v362 = vsel %vm352, %v348, 1326507024
        %v363 = vsel %vm351, %v345, %v362
        %v364 = vsel %vm350, %v361, %v363
        %v365 = vshll.u32 %v325, 8
        %v366 = vmul.u32.u64.compose %v365, %v364
        %v367 = vextract.low.u32 %v366
        %v368 = vextract.high.u32 %v366
        %v369 = vmul.u32.u64.compose %v365, %v360
        %v370 = vextract.low.u32 %v369
        %v371 = vextract.high.u32 %v369
        %v372 = vmul.u32 %v365, %v356
        %v373 = vadd.s32 %v368, %v370
        %vm374 = vc.u32 %v368, %v370
        %v375 = vadd.s32 %v371, 1
        %v376 = vsel %vm374, %v375, %v371
        %v377 = vadd.s32 %v372, %v376
        %v378 = vadd.s32 %v377, 536870912
        %v379 = vshrl.u32 %v378, 30
        %v380 = vshll.u32 %v379, 30
        %v381 = vsub.s32 %v377, %v380
        %vm382 = vcmp.lt.s32.totalorder %v381, 0
        %v383 = vsub.s32 0, %v381
        %v384 = vsel %vm382, %v383, %v381
        %v385 = vclz %v384
        %v386 = vsub.s32 %v385, 2
        %vm387 = vcmp.gt.s32.totalorder 0, %v386
        %v388 = vsel %vm387, 0, %v386
        %v389 = vsub.s32 32, %v388
        %v390 = vshll.u32 %v381, %v388
        %v391 = vshrl.u32 %v373, %v389
        %v392 = vor.u32 %v390, %v391
        %v393 = vsub.s32 4294967266, %v388
        %v394 = vadd.s32 %v393, 127
        %v395 = vshll.u32 %v394, 23
        %v396 = vor.u32 4788187, %v395
        %v397 = vand.u32 2147483647, %v396
        %v399 = vcvt.s32.f32 %v392
        %v400 = vmul.f32 %v399, %v397
        %v401 = vxor.u32 %v400, 2147483648
        %v402 = vsel %vm319, %v401, %v400
        %v403 = vsub.s32 4, %v379
        %v404 = vsel %vm319, %v403, %v379
        %v405 = vsel %vm318, %v213, %v402
        %v406 = vsel %vm318, 0, %v404
        %v407 = vcosq.f32.pop %v405
        %v408 = vsinq.f32.pop %v405
        %vm409 = vweird.f32 %v213
        %v410 = vadd.s32 %v406, 3
        %v411 = vand.u32 %v410, 3
        %vm412 = vcmp.lt.s32.totalorder %v411, 2
        %vm413 = vcmp.eq.s32.totalorder %v411, 0
        %v414 = vxor.u32 %v408, 2147483648
        %v415 = vsel %vm413, %v407, %v414
        %vm416 = vcmp.eq.s32.totalorder %v411, 2
        %v417 = vxor.u32 %v407, 2147483648
        %v418 = vsel %vm416, %v417, %v408
        %v419 = vsel %vm412, %v415, %v418
        %v420 = vsel %vm409, nan, %v419
        %v421 = vmul.f32 %v316, 1.1386294
        %v422 = vmul.f32 %v420, 1.1386294
        %423 = vst [vmem:[%s192] sm:$0xff] %v421
        %424 = vst [vmem:[%s199] sm:$0xff] %v422
        %s425 = sand.u32 %s94, 1
        %s426 = scalar_lea.sflag [#allocation4], %s425
        %s427 = sand.u32 %s94, 1
        %s428 = smul.addr %s427, 8
        %s429 = scalar_lea.vmem [#allocation5], %s428
        %s430 = sand.u32 %s120, 1
        %s431 = scalar_lea.sflag [#allocation7], %s430
        %s432 = sand.u32 %s120, 1
        %s433 = smul.addr %s432, 8
        %s434 = scalar_lea.vmem [#allocation6], %s433
        // Predicated region
        $region37: #{tpu_custom_call.1} parent=31 // pred_check
          %p435 = pneg %p104
        $region38: #{tpu_custom_call.1} parent=31 // pred_check_branch
          %437 = sbr.rel (%p435) target = $region40
        $region39: #{tpu_custom_call.1} parent=31 // pred_region
          %s439 = ssub.s32 128, 128
          %440 = vsyncadd %s426, %s439
          %s441 = smul.addr %s23, 128
          %s442 = scalar_lea.hbm %s3, %s441
          %s444 = sshll.u32 %s429, 4
          %s445 = int_to_ptr.vmem [resolvable:$true] %s444
          %447 = dma.vmem_to_hbm [thread:$0]  %s445, 128, %s442, %s426
        $region40: #{tpu_custom_call.1} parent=31 // pred_fallthru
          _
        // Predicated region
        $region41: #{tpu_custom_call.1} parent=31 // pred_check
          %p448 = pneg %p130
        $region42: #{tpu_custom_call.1} parent=31 // pred_check_branch
          %450 = sbr.rel (%p448) target = $region44
        $region43: #{tpu_custom_call.1} parent=31 // pred_region
          %s452 = ssub.s32 128, 128
          %453 = vsyncadd %s431, %s452
          %s454 = smul.addr %s23, 128
          %s455 = scalar_lea.hbm %s4, %s454
          %s457 = sshll.u32 %s434, 4
          %s458 = int_to_ptr.vmem [resolvable:$true] %s457
          %460 = dma.vmem_to_hbm [thread:$0]  %s458, 128, %s455, %s431
        $region44: #{tpu_custom_call.1} parent=31 // pred_fallthru
          _
      $region32: #{tpu_custom_call.1} parent=5 // pred_fallthru
        _
      %p461 = scmp.le.s32.totalorder 2, %s18
      // Predicated region
      $region45: #{tpu_custom_call.1} parent=5 // pred_check
        %p462 = pneg %p461
      $region46: #{tpu_custom_call.1} parent=5 // pred_check_branch
        %464 = sbr.rel (%p462) target = $region48
      $region47: #{tpu_custom_call.1} parent=5 // pred_region
        %s465 = ssub.s32 %s18, 2
        // Predicated region
        $region49: #{tpu_custom_call.1} parent=47 // pred_check
          %p466 = pneg %p110
        $region50: #{tpu_custom_call.1} parent=47 // pred_check_branch
          %468 = sbr.rel (%p466) target = $region52
        $region51: #{tpu_custom_call.1} parent=47 // pred_region
          %s469 = sand.u32 %s95, 1
          %s470 = scalar_lea.sflag [#allocation4], %s469
          %s471 = sand.u32 %s95, 1
          %s472 = smul.addr %s471, 8
          %s473 = scalar_lea.vmem [#allocation5], %s472
          %474 = dma.done %s470, 128
        $region52: #{tpu_custom_call.1} parent=47 // pred_fallthru
          _
        // Predicated region
        $region53: #{tpu_custom_call.1} parent=47 // pred_check
          %p475 = pneg %p136
        $region54: #{tpu_custom_call.1} parent=47 // pred_check_branch
          %477 = sbr.rel (%p475) target = $region56
        $region55: #{tpu_custom_call.1} parent=47 // pred_region
          %s478 = sand.u32 %s121, 1
          %s479 = scalar_lea.sflag [#allocation7], %s478
          %s480 = sand.u32 %s121, 1
          %s481 = smul.addr %s480, 8
          %s482 = scalar_lea.vmem [#allocation6], %s481
          %483 = dma.done %s479, 128
        $region56: #{tpu_custom_call.1} parent=47 // pred_fallthru
          _
      $region48: #{tpu_custom_call.1} parent=5 // pred_fallthru
        _
    $region6: #{tpu_custom_call.1} parent=1 // loop_footer
      %s22 = sadd.s32 1, %s18
    $region7: #{tpu_custom_call.1} parent=1 // loop_footer_branch
      %17 = sbr.rel target = $region3
    $region8: #{tpu_custom_call.1} parent=1 // loop_exit
      _
    %484 = vsyncpa [#allocation3], 1
    %s485 = scalar_lea.sflag [#allocation3], 1
    %486 = vsyncpa %s485, 1
    %487 = vsyncpa [#allocation4], 1
    %s488 = scalar_lea.sflag [#allocation4], 1
    %489 = vsyncpa %s488, 1
    %490 = vsyncpa [#allocation7], 1
    %s491 = scalar_lea.sflag [#allocation7], 1
    %492 = vsyncpa %s491, 1

</llo_original>
